<compile_context>
chip_gen: v7x
topology: tpu7x:2x2x1
jax: 0.10.0
libtpu: 0.0.40
codegen_flags: <defaults>
</compile_context>

<pallas_src>
import functools

import jax
import jax.numpy as jnp
from jax.experimental import pallas as pl
from jax.experimental.pallas import tpu as pltpu


def _round_up(n, m):
    return (n + m - 1) // m * m


# --------------------------------------------------------------------------- kernel
def cvae_kernel(
    x_ref, y_ref, eps_ref,
    e_w1x, e_w1y, e_b1, e_w2, e_b2, e_w3, e_b3, e_w41, e_b41,
    d_w1z, d_w1y, d_b1, d_w2, d_b2, d_w3, d_b3, d_w4, d_b4,
    out_ref,
):
    cdt = e_w1x.dtype                      # matmul-input dtype (f32 or bf16)
    y = y_ref[...].astype(jnp.float32)     # (tb, 1) condition, f32 epilogue math

    def dense(h, w_ref, b_ref):
        # MXU matmul, always f32 accumulation; bias is f32 (1, N) broadcast.
        return jnp.dot(h, w_ref[...], preferred_element_type=jnp.float32) + b_ref[...]

    def relu_c(a):
        return jnp.maximum(a, 0.0).astype(cdt)

    # ---- Encoder: cat([x, y]) @ W1 == x @ W1[:-1] + y * W1[-1:] ----
    h = relu_c(dense(x_ref[...], e_w1x, e_b1) + y * e_w1y[...])
    h = relu_c(dense(h, e_w2, e_b2))
    h = relu_c(dense(h, e_w3, e_b3))
    mu = dense(h, e_w41, e_b41)            # (tb, latent) f32; logvar == mu (fc41 reused)

    # ---- Reparameterize: z = eps * exp(0.5 * logvar) + mu, with logvar == mu ----
    z = (eps_ref[...].astype(jnp.float32) * jnp.exp(0.5 * mu) + mu).astype(cdt)

    # ---- Decoder: cat([z, y]) @ W1 == z @ W1[:-1] + y * W1[-1:] ----
    g = relu_c(dense(z, d_w1z, d_b1) + y * d_w1y[...])
    g = relu_c(dense(g, d_w2, d_b2))
    g = relu_c(dense(g, d_w3, d_b3))
    # sigmoid's divide is VALU work, but this kernel is HBM-bound so it hides under DMA.
    recon = jax.nn.sigmoid(dense(g, d_w4, d_b4))   # (tb, input) f32

    # ---- Pack [recon | mu] into the single output tile (one HBM write-back) ----
    n_in = recon.shape[1]
    out_ref[:, :n_in] = recon
    out_ref[:, n_in:] = mu


# --------------------------------------------------------------------------- params
def init_raw_params(key, input_size, latent_size, hidden_size=128):
    """Synthetic params with the torch-module shapes (W stored as (in, out)).

    The torch encoder also has fc42, but forward() never uses it (fc41 is applied
    twice), so it is not created here.
    """
    def linear(k, fan_in, fan_out):
        kw, kb = jax.random.split(k)
        bound = 1.0 / jnp.sqrt(jnp.float32(fan_in))
        w = jax.random.uniform(kw, (fan_in, fan_out), jnp.float32, -bound, bound)
        b = jax.random.uniform(kb, (fan_out,), jnp.float32, -bound, bound)
        return w, b

    ks = jax.random.split(key, 8)
    raw = {}
    # Encoder: (input_size+1) -> 128 -> 64 -> 16 -> latent
    raw["e_w1"], raw["e_b1"] = linear(ks[0], input_size + 1, 128)
    raw["e_w2"], raw["e_b2"] = linear(ks[1], 128, 64)
    raw["e_w3"], raw["e_b3"] = linear(ks[2], 64, 16)
    raw["e_w41"], raw["e_b41"] = linear(ks[3], 16, latent_size)
    # Decoder: (latent+1) -> hidden(128) -> 64 -> 128 -> input_size
    raw["d_w1"], raw["d_b1"] = linear(ks[4], latent_size + 1, hidden_size)
    raw["d_w2"], raw["d_b2"] = linear(ks[5], hidden_size, 64)
    raw["d_w3"], raw["d_b3"] = linear(ks[6], 64, 128)
    raw["d_w4"], raw["d_b4"] = linear(ks[7], 128, input_size)
    return raw


_PARAM_ORDER = [
    "e_w1x", "e_w1y", "e_b1", "e_w2", "e_b2", "e_w3", "e_b3", "e_w41", "e_b41",
    "d_w1z", "d_w1y", "d_b1", "d_w2", "d_b2", "d_w3", "d_b3", "d_w4", "d_b4",
]


def prepare_params(raw, compute_dtype=jnp.bfloat16):
    """Split the y-rows out of the concat-layer weights and set dtypes.

    Matmul weights go to `compute_dtype` (bf16 recommended on all generations);
    biases and the y-rows stay f32 because they live in the f32 epilogue.
    No zero padding: weights keep their exact torch shapes.
    """
    f32 = jnp.float32
    b2 = lambda b: b.reshape(1, -1).astype(f32)
    cd = lambda w: w.astype(compute_dtype)
    return {
        "e_w1x": cd(raw["e_w1"][:-1]), "e_w1y": raw["e_w1"][-1:].astype(f32),
        "e_b1": b2(raw["e_b1"]),
        "e_w2": cd(raw["e_w2"]), "e_b2": b2(raw["e_b2"]),
        "e_w3": cd(raw["e_w3"]), "e_b3": b2(raw["e_b3"]),
        "e_w41": cd(raw["e_w41"]), "e_b41": b2(raw["e_b41"]),
        "d_w1z": cd(raw["d_w1"][:-1]), "d_w1y": raw["d_w1"][-1:].astype(f32),
        "d_b1": b2(raw["d_b1"]),
        "d_w2": cd(raw["d_w2"]), "d_b2": b2(raw["d_b2"]),
        "d_w3": cd(raw["d_w3"]), "d_b3": b2(raw["d_b3"]),
        "d_w4": cd(raw["d_w4"]), "d_b4": b2(raw["d_b4"]),
    }


# --------------------------------------------------------------------------- wrapper
def _vmem_limit_bytes():
    # v5e/v6e: 128 MiB physical -> 96 MiB scoped; v7x: 64 MiB -> 48 MiB (headroom for
    # compiler-internal scratch).
    try:
        cap = int(pltpu.get_tpu_info().vmem_capacity_bytes)
    except Exception:
        cap = 64 * 1024 * 1024
    return min(cap * 3 // 4, 96 * 1024 * 1024)


@functools.partial(jax.jit, static_argnames=("tile_b", "core_parallel"))
def cvae_forward(x, y, eps, params, *, tile_b=4096, core_parallel=False):
    B, n_in = x.shape
    n_lat = eps.shape[1]
    n_out = n_in + n_lat
    cdt = params["e_w1x"].dtype

    vmem_limit = _vmem_limit_bytes()
    # Batch tile: multiple of 8 sublanes; clamp so the double-buffered I/O tiles plus
    # the (tb, 128) f32 intermediates stay well inside the scoped VMEM budget
    # (~4 KB/row conservative estimate).
    tb = _round_up(min(tile_b, max(B, 1)), 8)
    tb = min(tb, max(8, (vmem_limit // (2 * 4096)) // 8 * 8))
    Bp = _round_up(B, tb)

    pad = lambda a: jnp.pad(a, ((0, Bp - B), (0, 0)))
    x_p = pad(x.astype(cdt))                              # (Bp, n_in) compute dtype
    y_p = pad(y.reshape(-1, 1).astype(jnp.float32))       # (Bp, 1)  f32
    eps_p = pad(eps.astype(jnp.float32))                  # (Bp, n_lat) f32

    plist = tuple(params[k] for k in _PARAM_ORDER)

    row_spec = lambda d: pl.BlockSpec((tb, d), lambda i: (i, 0))
    # Constant index_map: each weight/bias is DMA'd once and stays VMEM-resident
    # across all batch tiles (total resident weights are only ~128 KB).
    const_spec = lambda a: pl.BlockSpec(a.shape, lambda i: (0, 0))

    flops = 2 * Bp * sum(
        int(params[k].shape[0]) * int(params[k].shape[1])
        for k in _PARAM_ORDER if "_w" in k
    )
    transcendentals = Bp * (n_lat + n_in)   # exp (reparam) + sigmoid (recon)
    bytes_accessed = (
        int(x_p.size) * x_p.dtype.itemsize
        + int(y_p.size) * 4 + int(eps_p.size) * 4
        + sum(int(v.size) * v.dtype.itemsize for v in plist)
        + Bp * n_out * 4
    )

    # CORE_PARALLEL gives an explicit 2-TensorCore split of the batch axis on v7x;
    # "parallel" is the safe default on single-TC chips (v5e/v6e).
    sem = (pltpu.CORE_PARALLEL,) if core_parallel else ("parallel",)

    out = pl.pallas_call(
        cvae_kernel,
        out_shape=jax.ShapeDtypeStruct((Bp, n_out), jnp.float32),
        grid=(Bp // tb,),
        in_specs=[row_spec(n_in), row_spec(1), row_spec(n_lat)]
        + [const_spec(p) for p in plist],
        out_specs=row_spec(n_out),
        compiler_params=pltpu.CompilerParams(
            dimension_semantics=sem,
            vmem_limit_bytes=int(vmem_limit),
        ),
        cost_estimate=pl.CostEstimate(
            flops=int(flops),
            transcendentals=int(transcendentals),
            bytes_accessed=int(bytes_accessed),
        ),
    )(x_p, y_p, eps_p, *plist)

    recon = out[:B, :n_in]
    mu = out[:B, n_in:]
    logvar = mu   # fc41 applied twice in the reference forward => logvar == mu exactly
    return recon, mu, logvar


# --------------------------------------------------------------------------- reference
def ref_forward(x, y, eps, raw):
    y2 = y.reshape(-1, 1)
    xin = jnp.concatenate([x, y2], axis=1)
    h1 = jax.nn.relu(xin @ raw["e_w1"] + raw["e_b1"])
    h2 = jax.nn.relu(h1 @ raw["e_w2"] + raw["e_b2"])
    h3 = jax.nn.relu(h2 @ raw["e_w3"] + raw["e_b3"])
    mu = h3 @ raw["e_w41"] + raw["e_b41"]
    logvar = mu
    z = eps * jnp.exp(0.5 * logvar) + mu
    zin = jnp.concatenate([z, y2], axis=1)
    g1 = jax.nn.relu(zin @ raw["d_w1"] + raw["d_b1"])
    g2 = jax.nn.relu(g1 @ raw["d_w2"] + raw["d_b2"])
    g3 = jax.nn.relu(g2 @ raw["d_w3"] + raw["d_b3"])
    return jax.nn.sigmoid(g3 @ raw["d_w4"] + raw["d_b4"]), mu, logvar


if __name__ == "__main__":
    B = 2
    INPUT_SIZE = 16
    LATENT_SIZE = 8

    key = jax.random.PRNGKey(0)
    kx, ky, keps, kparams = jax.random.split(key, 4)

    x = jax.random.uniform(kx, (B, INPUT_SIZE), jnp.float32)      # data
    y = jax.random.uniform(ky, (B,), jnp.float32)                 # condition -> (B, 1)
    eps = jax.random.normal(keps, (B, LATENT_SIZE), jnp.float32)  # reparam noise

    raw = init_raw_params(kparams, INPUT_SIZE, LATENT_SIZE, hidden_size=128)
    r_ref, mu_ref, lv_ref = ref_forward(x, y, eps, raw)

    # ---- f32 path: exact semantics of the reference module ----
    params_f32 = prepare_params(raw, compute_dtype=jnp.float32)
    recon, mu, logvar = jax.block_until_ready(cvae_forward(x, y, eps, params_f32))
    assert recon.shape == (B, INPUT_SIZE)
    assert mu.shape == (B, LATENT_SIZE) and logvar.shape == (B, LATENT_SIZE)
    assert jnp.allclose(recon, r_ref, atol=1e-5)
    assert jnp.allclose(mu, mu_ref, atol=1e-5)
    assert jnp.allclose(logvar, lv_ref, atol=1e-5)

    # ---- bf16 matmul-input path (recommended default on v5e/v6e/v7x); f32 epilogue ----
    params_bf16 = prepare_params(raw, compute_dtype=jnp.bfloat16)
    recon_bf, mu_bf, _ = jax.block_until_ready(cvae_forward(x, y, eps, params_bf16))
    assert jnp.allclose(recon_bf, r_ref, atol=1e-1)
    assert jnp.allclose(mu_bf, mu_ref, atol=1e-1)

    print("KERNEL_OK")
</pallas_src>

<mosaic_0001>
module attributes {stable_mosaic.version = 11 : i64} {
  func.func @cvae_kernel(%arg0: i32, %arg1: memref<8x16xf32, #tpu.memory_space<vmem>>, %arg2: memref<8x1xf32, #tpu.memory_space<vmem>>, %arg3: memref<8x8xf32, #tpu.memory_space<vmem>>, %arg4: memref<16x128xf32, #tpu.memory_space<vmem>>, %arg5: memref<1x128xf32, #tpu.memory_space<vmem>>, %arg6: memref<1x128xf32, #tpu.memory_space<vmem>>, %arg7: memref<128x64xf32, #tpu.memory_space<vmem>>, %arg8: memref<1x64xf32, #tpu.memory_space<vmem>>, %arg9: memref<64x16xf32, #tpu.memory_space<vmem>>, %arg10: memref<1x16xf32, #tpu.memory_space<vmem>>, %arg11: memref<16x8xf32, #tpu.memory_space<vmem>>, %arg12: memref<1x8xf32, #tpu.memory_space<vmem>>, %arg13: memref<8x128xf32, #tpu.memory_space<vmem>>, %arg14: memref<1x128xf32, #tpu.memory_space<vmem>>, %arg15: memref<1x128xf32, #tpu.memory_space<vmem>>, %arg16: memref<128x64xf32, #tpu.memory_space<vmem>>, %arg17: memref<1x64xf32, #tpu.memory_space<vmem>>, %arg18: memref<64x128xf32, #tpu.memory_space<vmem>>, %arg19: memref<1x128xf32, #tpu.memory_space<vmem>>, %arg20: memref<128x16xf32, #tpu.memory_space<vmem>>, %arg21: memref<1x16xf32, #tpu.memory_space<vmem>>, %arg22: memref<8x24xf32, #tpu.memory_space<vmem>>) attributes {dimension_semantics = [#tpu.dimension_semantics<parallel>], iteration_bounds = array<i64: 1>, scalar_prefetch = 0 : i64, scratch_operands = 0 : i64, tpu.core_type = #tpu.core_type<tc>, window_params = [{transform_indices = @transform_0, window_bounds = array<i64: 8, 16>}, {transform_indices = @transform_1, window_bounds = array<i64: 8, 1>}, {transform_indices = @transform_2, window_bounds = array<i64: 8, 8>}, {pipeline_mode = #tpu.pipeline_mode<synchronous>, transform_indices = @transform_3, window_bounds = array<i64: 16, 128>}, {pipeline_mode = #tpu.pipeline_mode<synchronous>, transform_indices = @transform_4, window_bounds = array<i64: 1, 128>}, {pipeline_mode = #tpu.pipeline_mode<synchronous>, transform_indices = @transform_5, window_bounds = array<i64: 1, 128>}, {pipeline_mode = #tpu.pipeline_mode<synchronous>, transform_indices = @transform_6, window_bounds = array<i64: 128, 64>}, {pipeline_mode = #tpu.pipeline_mode<synchronous>, transform_indices = @transform_7, window_bounds = array<i64: 1, 64>}, {pipeline_mode = #tpu.pipeline_mode<synchronous>, transform_indices = @transform_8, window_bounds = array<i64: 64, 16>}, {pipeline_mode = #tpu.pipeline_mode<synchronous>, transform_indices = @transform_9, window_bounds = array<i64: 1, 16>}, {pipeline_mode = #tpu.pipeline_mode<synchronous>, transform_indices = @transform_10, window_bounds = array<i64: 16, 8>}, {pipeline_mode = #tpu.pipeline_mode<synchronous>, transform_indices = @transform_11, window_bounds = array<i64: 1, 8>}, {pipeline_mode = #tpu.pipeline_mode<synchronous>, transform_indices = @transform_12, window_bounds = array<i64: 8, 128>}, {pipeline_mode = #tpu.pipeline_mode<synchronous>, transform_indices = @transform_13, window_bounds = array<i64: 1, 128>}, {pipeline_mode = #tpu.pipeline_mode<synchronous>, transform_indices = @transform_14, window_bounds = array<i64: 1, 128>}, {pipeline_mode = #tpu.pipeline_mode<synchronous>, transform_indices = @transform_15, window_bounds = array<i64: 128, 64>}, {pipeline_mode = #tpu.pipeline_mode<synchronous>, transform_indices = @transform_16, window_bounds = array<i64: 1, 64>}, {pipeline_mode = #tpu.pipeline_mode<synchronous>, transform_indices = @transform_17, window_bounds = array<i64: 64, 128>}, {pipeline_mode = #tpu.pipeline_mode<synchronous>, transform_indices = @transform_18, window_bounds = array<i64: 1, 128>}, {pipeline_mode = #tpu.pipeline_mode<synchronous>, transform_indices = @transform_19, window_bounds = array<i64: 128, 16>}, {pipeline_mode = #tpu.pipeline_mode<synchronous>, transform_indices = @transform_20, window_bounds = array<i64: 1, 16>}, {transform_indices = @transform_21, window_bounds = array<i64: 8, 24>}]} {
    %c0 = arith.constant 0 : index
    %c0_0 = arith.constant 0 : index
    %0 = vector.load %arg2[%c0, %c0_0] : memref<8x1xf32, #tpu.memory_space<vmem>>, vector<8x1xf32>
    %c0_1 = arith.constant 0 : index
    %c0_2 = arith.constant 0 : index
    %1 = vector.load %arg1[%c0_1, %c0_2] : memref<8x16xf32, #tpu.memory_space<vmem>>, vector<8x16xf32>
    %c0_3 = arith.constant 0 : index
    %c0_4 = arith.constant 0 : index
    %2 = vector.load %arg4[%c0_3, %c0_4] : memref<16x128xf32, #tpu.memory_space<vmem>>, vector<16x128xf32>
    %cst = arith.constant dense<0.000000e+00> : vector<8x128xf32>
    %3 = tpu.matmul %1, %2, %cst {dimension_numbers = #tpu.dot_dimension_numbers<[1], [0], [0], [1], [0, 0, 1, 1], [], []>} : vector<8x16xf32>, vector<16x128xf32>, vector<8x128xf32> -> vector<8x128xf32>
    %c0_5 = arith.constant 0 : index
    %c0_6 = arith.constant 0 : index
    %4 = vector.load %arg6[%c0_5, %c0_6] : memref<1x128xf32, #tpu.memory_space<vmem>>, vector<1x128xf32>
    %5 = vector.broadcast %4 : vector<1x128xf32> to vector<8x128xf32>
    %6 = arith.addf %3, %5 : vector<8x128xf32>
    %c0_7 = arith.constant 0 : index
    %c0_8 = arith.constant 0 : index
    %7 = vector.load %arg5[%c0_7, %c0_8] : memref<1x128xf32, #tpu.memory_space<vmem>>, vector<1x128xf32>
    %8 = vector.broadcast %0 : vector<8x1xf32> to vector<8x128xf32>
    %9 = vector.broadcast %7 : vector<1x128xf32> to vector<8x128xf32>
    %10 = arith.mulf %8, %9 : vector<8x128xf32>
    %11 = arith.addf %6, %10 : vector<8x128xf32>
    %cst_9 = arith.constant 0.000000e+00 : f32
    %12 = vector.broadcast %cst_9 : f32 to vector<8x128xf32>
    %13 = arith.maximumf %11, %12 : vector<8x128xf32>
    %c0_10 = arith.constant 0 : index
    %c0_11 = arith.constant 0 : index
    %14 = vector.load %arg7[%c0_10, %c0_11] : memref<128x64xf32, #tpu.memory_space<vmem>>, vector<128x64xf32>
    %cst_12 = arith.constant dense<0.000000e+00> : vector<8x64xf32>
    %15 = tpu.matmul %13, %14, %cst_12 {dimension_numbers = #tpu.dot_dimension_numbers<[1], [0], [0], [1], [0, 0, 1, 1], [], []>} : vector<8x128xf32>, vector<128x64xf32>, vector<8x64xf32> -> vector<8x64xf32>
    %c0_13 = arith.constant 0 : index
    %c0_14 = arith.constant 0 : index
    %16 = vector.load %arg8[%c0_13, %c0_14] : memref<1x64xf32, #tpu.memory_space<vmem>>, vector<1x64xf32>
    %17 = vector.broadcast %16 : vector<1x64xf32> to vector<8x64xf32>
    %18 = arith.addf %15, %17 : vector<8x64xf32>
    %cst_15 = arith.constant 0.000000e+00 : f32
    %19 = vector.broadcast %cst_15 : f32 to vector<8x64xf32>
    %20 = arith.maximumf %18, %19 : vector<8x64xf32>
    %c0_16 = arith.constant 0 : index
    %c0_17 = arith.constant 0 : index
    %21 = vector.load %arg9[%c0_16, %c0_17] : memref<64x16xf32, #tpu.memory_space<vmem>>, vector<64x16xf32>
    %cst_18 = arith.constant dense<0.000000e+00> : vector<8x16xf32>
    %22 = tpu.matmul %20, %21, %cst_18 {dimension_numbers = #tpu.dot_dimension_numbers<[1], [0], [0], [1], [0, 0, 1, 1], [], []>} : vector<8x64xf32>, vector<64x16xf32>, vector<8x16xf32> -> vector<8x16xf32>
    %c0_19 = arith.constant 0 : index
    %c0_20 = arith.constant 0 : index
    %23 = vector.load %arg10[%c0_19, %c0_20] : memref<1x16xf32, #tpu.memory_space<vmem>>, vector<1x16xf32>
    %24 = vector.broadcast %23 : vector<1x16xf32> to vector<8x16xf32>
    %25 = arith.addf %22, %24 : vector<8x16xf32>
    %cst_21 = arith.constant 0.000000e+00 : f32
    %26 = vector.broadcast %cst_21 : f32 to vector<8x16xf32>
    %27 = arith.maximumf %25, %26 : vector<8x16xf32>
    %c0_22 = arith.constant 0 : index
    %c0_23 = arith.constant 0 : index
    %28 = vector.load %arg11[%c0_22, %c0_23] : memref<16x8xf32, #tpu.memory_space<vmem>>, vector<16x8xf32>
    %cst_24 = arith.constant dense<0.000000e+00> : vector<8x8xf32>
    %29 = tpu.matmul %27, %28, %cst_24 {dimension_numbers = #tpu.dot_dimension_numbers<[1], [0], [0], [1], [0, 0, 1, 1], [], []>} : vector<8x16xf32>, vector<16x8xf32>, vector<8x8xf32> -> vector<8x8xf32>
    %c0_25 = arith.constant 0 : index
    %c0_26 = arith.constant 0 : index
    %30 = vector.load %arg12[%c0_25, %c0_26] : memref<1x8xf32, #tpu.memory_space<vmem>>, vector<1x8xf32>
    %31 = vector.broadcast %30 : vector<1x8xf32> to vector<8x8xf32>
    %32 = arith.addf %29, %31 : vector<8x8xf32>
    %c0_27 = arith.constant 0 : index
    %c0_28 = arith.constant 0 : index
    %33 = vector.load %arg3[%c0_27, %c0_28] : memref<8x8xf32, #tpu.memory_space<vmem>>, vector<8x8xf32>
    %cst_29 = arith.constant 5.000000e-01 : f32
    %34 = vector.broadcast %cst_29 : f32 to vector<8x8xf32>
    %35 = arith.mulf %34, %32 : vector<8x8xf32>
    %36 = math.exp %35 : vector<8x8xf32>
    %37 = arith.mulf %33, %36 : vector<8x8xf32>
    %38 = arith.addf %37, %32 : vector<8x8xf32>
    %c0_30 = arith.constant 0 : index
    %c0_31 = arith.constant 0 : index
    %39 = vector.load %arg13[%c0_30, %c0_31] : memref<8x128xf32, #tpu.memory_space<vmem>>, vector<8x128xf32>
    %cst_32 = arith.constant dense<0.000000e+00> : vector<8x128xf32>
    %40 = tpu.matmul %38, %39, %cst_32 {dimension_numbers = #tpu.dot_dimension_numbers<[1], [0], [0], [1], [0, 0, 1, 1], [], []>} : vector<8x8xf32>, vector<8x128xf32>, vector<8x128xf32> -> vector<8x128xf32>
    %c0_33 = arith.constant 0 : index
    %c0_34 = arith.constant 0 : index
    %41 = vector.load %arg15[%c0_33, %c0_34] : memref<1x128xf32, #tpu.memory_space<vmem>>, vector<1x128xf32>
    %42 = vector.broadcast %41 : vector<1x128xf32> to vector<8x128xf32>
    %43 = arith.addf %40, %42 : vector<8x128xf32>
    %c0_35 = arith.constant 0 : index
    %c0_36 = arith.constant 0 : index
    %44 = vector.load %arg14[%c0_35, %c0_36] : memref<1x128xf32, #tpu.memory_space<vmem>>, vector<1x128xf32>
    %45 = vector.broadcast %0 : vector<8x1xf32> to vector<8x128xf32>
    %46 = vector.broadcast %44 : vector<1x128xf32> to vector<8x128xf32>
    %47 = arith.mulf %45, %46 : vector<8x128xf32>
    %48 = arith.addf %43, %47 : vector<8x128xf32>
    %cst_37 = arith.constant 0.000000e+00 : f32
    %49 = vector.broadcast %cst_37 : f32 to vector<8x128xf32>
    %50 = arith.maximumf %48, %49 : vector<8x128xf32>
    %c0_38 = arith.constant 0 : index
    %c0_39 = arith.constant 0 : index
    %51 = vector.load %arg16[%c0_38, %c0_39] : memref<128x64xf32, #tpu.memory_space<vmem>>, vector<128x64xf32>
    %cst_40 = arith.constant dense<0.000000e+00> : vector<8x64xf32>
    %52 = tpu.matmul %50, %51, %cst_40 {dimension_numbers = #tpu.dot_dimension_numbers<[1], [0], [0], [1], [0, 0, 1, 1], [], []>} : vector<8x128xf32>, vector<128x64xf32>, vector<8x64xf32> -> vector<8x64xf32>
    %c0_41 = arith.constant 0 : index
    %c0_42 = arith.constant 0 : index
    %53 = vector.load %arg17[%c0_41, %c0_42] : memref<1x64xf32, #tpu.memory_space<vmem>>, vector<1x64xf32>
    %54 = vector.broadcast %53 : vector<1x64xf32> to vector<8x64xf32>
    %55 = arith.addf %52, %54 : vector<8x64xf32>
    %cst_43 = arith.constant 0.000000e+00 : f32
    %56 = vector.broadcast %cst_43 : f32 to vector<8x64xf32>
    %57 = arith.maximumf %55, %56 : vector<8x64xf32>
    %c0_44 = arith.constant 0 : index
    %c0_45 = arith.constant 0 : index
    %58 = vector.load %arg18[%c0_44, %c0_45] : memref<64x128xf32, #tpu.memory_space<vmem>>, vector<64x128xf32>
    %cst_46 = arith.constant dense<0.000000e+00> : vector<8x128xf32>
    %59 = tpu.matmul %57, %58, %cst_46 {dimension_numbers = #tpu.dot_dimension_numbers<[1], [0], [0], [1], [0, 0, 1, 1], [], []>} : vector<8x64xf32>, vector<64x128xf32>, vector<8x128xf32> -> vector<8x128xf32>
    %c0_47 = arith.constant 0 : index
    %c0_48 = arith.constant 0 : index
    %60 = vector.load %arg19[%c0_47, %c0_48] : memref<1x128xf32, #tpu.memory_space<vmem>>, vector<1x128xf32>
    %61 = vector.broadcast %60 : vector<1x128xf32> to vector<8x128xf32>
    %62 = arith.addf %59, %61 : vector<8x128xf32>
    %cst_49 = arith.constant 0.000000e+00 : f32
    %63 = vector.broadcast %cst_49 : f32 to vector<8x128xf32>
    %64 = arith.maximumf %62, %63 : vector<8x128xf32>
    %c0_50 = arith.constant 0 : index
    %c0_51 = arith.constant 0 : index
    %65 = vector.load %arg20[%c0_50, %c0_51] : memref<128x16xf32, #tpu.memory_space<vmem>>, vector<128x16xf32>
    %cst_52 = arith.constant dense<0.000000e+00> : vector<8x16xf32>
    %66 = tpu.matmul %64, %65, %cst_52 {dimension_numbers = #tpu.dot_dimension_numbers<[1], [0], [0], [1], [0, 0, 1, 1], [], []>} : vector<8x128xf32>, vector<128x16xf32>, vector<8x16xf32> -> vector<8x16xf32>
    %c0_53 = arith.constant 0 : index
    %c0_54 = arith.constant 0 : index
    %67 = vector.load %arg21[%c0_53, %c0_54] : memref<1x16xf32, #tpu.memory_space<vmem>>, vector<1x16xf32>
    %68 = vector.broadcast %67 : vector<1x16xf32> to vector<8x16xf32>
    %69 = arith.addf %66, %68 : vector<8x16xf32>
    %70 = arith.negf %69 : vector<8x16xf32>
    %71 = math.exp %70 : vector<8x16xf32>
    %cst_55 = arith.constant 1.000000e+00 : f32
    %72 = vector.broadcast %cst_55 : f32 to vector<8x16xf32>
    %73 = arith.addf %72, %71 : vector<8x16xf32>
    %74 = arith.divf %72, %73 : vector<8x16xf32>
    %c0_56 = arith.constant 0 : index
    %c0_57 = arith.constant 0 : index
    %75 = vector.load %arg22[%c0_56, %c0_57] : memref<8x24xf32, #tpu.memory_space<vmem>>, vector<8x16xf32>
    tpu.vector_store %arg22[%c0_56, %c0_57], %74 {strides = array<i32>} : memref<8x24xf32, #tpu.memory_space<vmem>>, vector<8x16xf32>,
    %c0_58 = arith.constant 0 : index
    %c16 = arith.constant 16 : index
    %76 = vector.load %arg22[%c0_58, %c16] : memref<8x24xf32, #tpu.memory_space<vmem>>, vector<8x8xf32>
    tpu.vector_store %arg22[%c0_58, %c16], %32 {strides = array<i32>} : memref<8x24xf32, #tpu.memory_space<vmem>>, vector<8x8xf32>,
    return
  }
  func.func @transform_0(%arg0: i32) -> (i32, i32) {
    %c0_i32 = arith.constant 0 : i32
    %c0_i32_0 = arith.constant 0 : i32
    return %arg0, %c0_i32 : i32, i32
  }
  func.func @transform_1(%arg0: i32) -> (i32, i32) {
    %c0_i32 = arith.constant 0 : i32
    %c0_i32_0 = arith.constant 0 : i32
    return %arg0, %c0_i32 : i32, i32
  }
  func.func @transform_2(%arg0: i32) -> (i32, i32) {
    %c0_i32 = arith.constant 0 : i32
    %c0_i32_0 = arith.constant 0 : i32
    return %arg0, %c0_i32 : i32, i32
  }
  func.func @transform_3(%arg0: i32) -> (i32, i32) {
    %c0_i32 = arith.constant 0 : i32
    %c0_i32_0 = arith.constant 0 : i32
    %c0_i32_1 = arith.constant 0 : i32
    return %c0_i32, %c0_i32_0 : i32, i32
  }
  func.func @transform_4(%arg0: i32) -> (i32, i32) {
    %c0_i32 = arith.constant 0 : i32
    %c0_i32_0 = arith.constant 0 : i32
    %c0_i32_1 = arith.constant 0 : i32
    return %c0_i32, %c0_i32_0 : i32, i32
  }
  func.func @transform_5(%arg0: i32) -> (i32, i32) {
    %c0_i32 = arith.constant 0 : i32
    %c0_i32_0 = arith.constant 0 : i32
    %c0_i32_1 = arith.constant 0 : i32
    return %c0_i32, %c0_i32_0 : i32, i32
  }
  func.func @transform_6(%arg0: i32) -> (i32, i32) {
    %c0_i32 = arith.constant 0 : i32
    %c0_i32_0 = arith.constant 0 : i32
    %c0_i32_1 = arith.constant 0 : i32
    return %c0_i32, %c0_i32_0 : i32, i32
  }
  func.func @transform_7(%arg0: i32) -> (i32, i32) {
    %c0_i32 = arith.constant 0 : i32
    %c0_i32_0 = arith.constant 0 : i32
    %c0_i32_1 = arith.constant 0 : i32
    return %c0_i32, %c0_i32_0 : i32, i32
  }
  func.func @transform_8(%arg0: i32) -> (i32, i32) {
    %c0_i32 = arith.constant 0 : i32
    %c0_i32_0 = arith.constant 0 : i32
    %c0_i32_1 = arith.constant 0 : i32
    return %c0_i32, %c0_i32_0 : i32, i32
  }
  func.func @transform_9(%arg0: i32) -> (i32, i32) {
    %c0_i32 = arith.constant 0 : i32
    %c0_i32_0 = arith.constant 0 : i32
    %c0_i32_1 = arith.constant 0 : i32
    return %c0_i32, %c0_i32_0 : i32, i32
  }
  func.func @transform_10(%arg0: i32) -> (i32, i32) {
    %c0_i32 = arith.constant 0 : i32
    %c0_i32_0 = arith.constant 0 : i32
    %c0_i32_1 = arith.constant 0 : i32
    return %c0_i32, %c0_i32_0 : i32, i32
  }
  func.func @transform_11(%arg0: i32) -> (i32, i32) {
    %c0_i32 = arith.constant 0 : i32
    %c0_i32_0 = arith.constant 0 : i32
    %c0_i32_1 = arith.constant 0 : i32
    return %c0_i32, %c0_i32_0 : i32, i32
  }
  func.func @transform_12(%arg0: i32) -> (i32, i32) {
    %c0_i32 = arith.constant 0 : i32
    %c0_i32_0 = arith.constant 0 : i32
    %c0_i32_1 = arith.constant 0 : i32
    return %c0_i32, %c0_i32_0 : i32, i32
  }
  func.func @transform_13(%arg0: i32) -> (i32, i32) {
    %c0_i32 = arith.constant 0 : i32
    %c0_i32_0 = arith.constant 0 : i32
    %c0_i32_1 = arith.constant 0 : i32
    return %c0_i32, %c0_i32_0 : i32, i32
  }
  func.func @transform_14(%arg0: i32) -> (i32, i32) {
    %c0_i32 = arith.constant 0 : i32
    %c0_i32_0 = arith.constant 0 : i32
    %c0_i32_1 = arith.constant 0 : i32
    return %c0_i32, %c0_i32_0 : i32, i32
  }
  func.func @transform_15(%arg0: i32) -> (i32, i32) {
    %c0_i32 = arith.constant 0 : i32
    %c0_i32_0 = arith.constant 0 : i32
    %c0_i32_1 = arith.constant 0 : i32
    return %c0_i32, %c0_i32_0 : i32, i32
  }
  func.func @transform_16(%arg0: i32) -> (i32, i32) {
    %c0_i32 = arith.constant 0 : i32
    %c0_i32_0 = arith.constant 0 : i32
    %c0_i32_1 = arith.constant 0 : i32
    return %c0_i32, %c0_i32_0 : i32, i32
  }
  func.func @transform_17(%arg0: i32) -> (i32, i32) {
    %c0_i32 = arith.constant 0 : i32
    %c0_i32_0 = arith.constant 0 : i32
    %c0_i32_1 = arith.constant 0 : i32
    return %c0_i32, %c0_i32_0 : i32, i32
  }
  func.func @transform_18(%arg0: i32) -> (i32, i32) {
    %c0_i32 = arith.constant 0 : i32
    %c0_i32_0 = arith.constant 0 : i32
    %c0_i32_1 = arith.constant 0 : i32
    return %c0_i32, %c0_i32_0 : i32, i32
  }
  func.func @transform_19(%arg0: i32) -> (i32, i32) {
    %c0_i32 = arith.constant 0 : i32
    %c0_i32_0 = arith.constant 0 : i32
    %c0_i32_1 = arith.constant 0 : i32
    return %c0_i32, %c0_i32_0 : i32, i32
  }
  func.func @transform_20(%arg0: i32) -> (i32, i32) {
    %c0_i32 = arith.constant 0 : i32
    %c0_i32_0 = arith.constant 0 : i32
    %c0_i32_1 = arith.constant 0 : i32
    return %c0_i32, %c0_i32_0 : i32, i32
  }
  func.func @transform_21(%arg0: i32) -> (i32, i32) {
    %c0_i32 = arith.constant 0 : i32
    %c0_i32_0 = arith.constant 0 : i32
    return %arg0, %c0_i32 : i32, i32
  }
}

</mosaic_0001>

<llo_original>
// kernel: cvae_forward.1
$region0: #{cvae_forward.1}
  #allocation0 [shape = 'u32[]', space=smem, size = 0x4, offset = 0x4, fixed_abs, tag = 'smem constant byte address 0x4 - core index']
  #allocation1 [shape = 'u32[144,128]{1,0:T(1,128)}', space=vmem, size = 0x12000, scoped, tag = 'internal scratch']
  %s0 = inlined_call_operand.vmem [shape: f32[8,16], index: 0, kind: input, shape index: {}]
  %s1 = inlined_call_operand.vmem [shape: f32[8,1], index: 1, kind: input, shape index: {}]
  %s2 = inlined_call_operand.vmem [shape: f32[8,8], index: 2, kind: input, shape index: {}]
  %s3 = inlined_call_operand.vmem [shape: f32[16,128], index: 3, kind: input, shape index: {}]
  %s4 = inlined_call_operand.vmem [shape: f32[1,128], index: 4, kind: input, shape index: {}]
  %s5 = inlined_call_operand.vmem [shape: f32[1,128], index: 5, kind: input, shape index: {}]
  %s6 = inlined_call_operand.vmem [shape: f32[128,64], index: 6, kind: input, shape index: {}]
  %s7 = inlined_call_operand.vmem [shape: f32[1,64], index: 7, kind: input, shape index: {}]
  %s8 = inlined_call_operand.vmem [shape: f32[64,16], index: 8, kind: input, shape index: {}]
  %s9 = inlined_call_operand.vmem [shape: f32[1,16], index: 9, kind: input, shape index: {}]
  %s10 = inlined_call_operand.vmem [shape: f32[16,8], index: 10, kind: input, shape index: {}]
  %s11 = inlined_call_operand.vmem [shape: f32[1,8], index: 11, kind: input, shape index: {}]
  %s12 = inlined_call_operand.vmem [shape: f32[8,128], index: 12, kind: input, shape index: {}]
  %s13 = inlined_call_operand.vmem [shape: f32[1,128], index: 13, kind: input, shape index: {}]
  %s14 = inlined_call_operand.vmem [shape: f32[1,128], index: 14, kind: input, shape index: {}]
  %s15 = inlined_call_operand.vmem [shape: f32[128,64], index: 15, kind: input, shape index: {}]
  %s16 = inlined_call_operand.vmem [shape: f32[1,64], index: 16, kind: input, shape index: {}]
  %s17 = inlined_call_operand.vmem [shape: f32[64,128], index: 17, kind: input, shape index: {}]
  %s18 = inlined_call_operand.vmem [shape: f32[1,128], index: 18, kind: input, shape index: {}]
  %s19 = inlined_call_operand.vmem [shape: f32[128,16], index: 19, kind: input, shape index: {}]
  %s20 = inlined_call_operand.vmem [shape: f32[1,16], index: 20, kind: input, shape index: {}]
  %s21 = inlined_call_operand.vmem [shape: f32[8,24], index: 21, kind: output, shape index: {}]
  %s22 = sld [smem:[#allocation0]]
  $region94: #{cvae_forward.1} parent=0
    _
  %s24 = ssub.s32 1, %s22
  %s25 = scalar_select 0, %s24, %s22
  // Predicated region
  $region2: #{cvae_forward.1} parent=0 // pred_check
    _
  $region3: #{cvae_forward.1} parent=0 // pred_check_branch
    %27 = sbr.rel (0) target = $region5
  $region4: #{cvae_forward.1} parent=0 // pred_region
    _
  $region5: #{cvae_forward.1} parent=0 // pred_fallthru
    _
  // Predicated region
  $region6: #{cvae_forward.1} parent=0 // pred_check
    _
  $region7: #{cvae_forward.1} parent=0 // pred_check_branch
    %29 = sbr.rel (0) target = $region9
  $region8: #{cvae_forward.1} parent=0 // pred_region
    _
  $region9: #{cvae_forward.1} parent=0 // pred_fallthru
    _
  // Predicated region
  $region10: #{cvae_forward.1} parent=0 // pred_check
    _
  $region11: #{cvae_forward.1} parent=0 // pred_check_branch
    %31 = sbr.rel (0) target = $region13
  $region12: #{cvae_forward.1} parent=0 // pred_region
    _
  $region13: #{cvae_forward.1} parent=0 // pred_fallthru
    _
  // Predicated region
  $region14: #{cvae_forward.1} parent=0 // pred_check
    _
  $region15: #{cvae_forward.1} parent=0 // pred_check_branch
    %33 = sbr.rel (0) target = $region17
  $region16: #{cvae_forward.1} parent=0 // pred_region
    _
  $region17: #{cvae_forward.1} parent=0 // pred_fallthru
    _
  // Predicated region
  $region18: #{cvae_forward.1} parent=0 // pred_check
    _
  $region19: #{cvae_forward.1} parent=0 // pred_check_branch
    %35 = sbr.rel (0) target = $region21
  $region20: #{cvae_forward.1} parent=0 // pred_region
    _
  $region21: #{cvae_forward.1} parent=0 // pred_fallthru
    _
  // Predicated region
  $region22: #{cvae_forward.1} parent=0 // pred_check
    _
  $region23: #{cvae_forward.1} parent=0 // pred_check_branch
    %37 = sbr.rel (0) target = $region25
  $region24: #{cvae_forward.1} parent=0 // pred_region
    _
  $region25: #{cvae_forward.1} parent=0 // pred_fallthru
    _
  // Predicated region
  $region26: #{cvae_forward.1} parent=0 // pred_check
    _
  $region27: #{cvae_forward.1} parent=0 // pred_check_branch
    %39 = sbr.rel (0) target = $region29
  $region28: #{cvae_forward.1} parent=0 // pred_region
    _
  $region29: #{cvae_forward.1} parent=0 // pred_fallthru
    _
  // Predicated region
  $region30: #{cvae_forward.1} parent=0 // pred_check
    _
  $region31: #{cvae_forward.1} parent=0 // pred_check_branch
    %41 = sbr.rel (0) target = $region33
  $region32: #{cvae_forward.1} parent=0 // pred_region
    _
  $region33: #{cvae_forward.1} parent=0 // pred_fallthru
    _
  // Predicated region
  $region34: #{cvae_forward.1} parent=0 // pred_check
    _
  $region35: #{cvae_forward.1} parent=0 // pred_check_branch
    %43 = sbr.rel (0) target = $region37
  $region36: #{cvae_forward.1} parent=0 // pred_region
    _
  $region37: #{cvae_forward.1} parent=0 // pred_fallthru
    _
  // Predicated region
  $region38: #{cvae_forward.1} parent=0 // pred_check
    _
  $region39: #{cvae_forward.1} parent=0 // pred_check_branch
    %45 = sbr.rel (0) target = $region41
  $region40: #{cvae_forward.1} parent=0 // pred_region
    _
  $region41: #{cvae_forward.1} parent=0 // pred_fallthru
    _
  // Predicated region
  $region42: #{cvae_forward.1} parent=0 // pred_check
    _
  $region43: #{cvae_forward.1} parent=0 // pred_check_branch
    %47 = sbr.rel (0) target = $region45
  $region44: #{cvae_forward.1} parent=0 // pred_region
    _
  $region45: #{cvae_forward.1} parent=0 // pred_fallthru
    _
  // Predicated region
  $region46: #{cvae_forward.1} parent=0 // pred_check
    _
  $region47: #{cvae_forward.1} parent=0 // pred_check_branch
    %49 = sbr.rel (0) target = $region49
  $region48: #{cvae_forward.1} parent=0 // pred_region
    _
  $region49: #{cvae_forward.1} parent=0 // pred_fallthru
    _
  // Predicated region
  $region50: #{cvae_forward.1} parent=0 // pred_check
    _
  $region51: #{cvae_forward.1} parent=0 // pred_check_branch
    %51 = sbr.rel (0) target = $region53
  $region52: #{cvae_forward.1} parent=0 // pred_region
    _
  $region53: #{cvae_forward.1} parent=0 // pred_fallthru
    _
  // Predicated region
  $region54: #{cvae_forward.1} parent=0 // pred_check
    _
  $region55: #{cvae_forward.1} parent=0 // pred_check_branch
    %53 = sbr.rel (0) target = $region57
  $region56: #{cvae_forward.1} parent=0 // pred_region
    _
  $region57: #{cvae_forward.1} parent=0 // pred_fallthru
    _
  // Predicated region
  $region58: #{cvae_forward.1} parent=0 // pred_check
    _
  $region59: #{cvae_forward.1} parent=0 // pred_check_branch
    %55 = sbr.rel (0) target = $region61
  $region60: #{cvae_forward.1} parent=0 // pred_region
    _
  $region61: #{cvae_forward.1} parent=0 // pred_fallthru
    _
  // Predicated region
  $region62: #{cvae_forward.1} parent=0 // pred_check
    _
  $region63: #{cvae_forward.1} parent=0 // pred_check_branch
    %57 = sbr.rel (0) target = $region65
  $region64: #{cvae_forward.1} parent=0 // pred_region
    _
  $region65: #{cvae_forward.1} parent=0 // pred_fallthru
    _
  // Predicated region
  $region66: #{cvae_forward.1} parent=0 // pred_check
    _
  $region67: #{cvae_forward.1} parent=0 // pred_check_branch
    %59 = sbr.rel (0) target = $region69
  $region68: #{cvae_forward.1} parent=0 // pred_region
    _
  $region69: #{cvae_forward.1} parent=0 // pred_fallthru
    _
  // Predicated region
  $region70: #{cvae_forward.1} parent=0 // pred_check
    _
  $region71: #{cvae_forward.1} parent=0 // pred_check_branch
    %61 = sbr.rel (0) target = $region73
  $region72: #{cvae_forward.1} parent=0 // pred_region
    _
  $region73: #{cvae_forward.1} parent=0 // pred_fallthru
    _
  // Predicated region
  $region74: #{cvae_forward.1} parent=0 // pred_check
    _
  $region75: #{cvae_forward.1} parent=0 // pred_check_branch
    %63 = sbr.rel (0) target = $region77
  $region76: #{cvae_forward.1} parent=0 // pred_region
    _
  $region77: #{cvae_forward.1} parent=0 // pred_fallthru
    _
  // Predicated region
  $region78: #{cvae_forward.1} parent=0 // pred_check
    _
  $region79: #{cvae_forward.1} parent=0 // pred_check_branch
    %65 = sbr.rel (0) target = $region81
  $region80: #{cvae_forward.1} parent=0 // pred_region
    _
  $region81: #{cvae_forward.1} parent=0 // pred_fallthru
    _
  // Predicated region
  $region82: #{cvae_forward.1} parent=0 // pred_check
    _
  $region83: #{cvae_forward.1} parent=0 // pred_check_branch
    %67 = sbr.rel (0) target = $region85
  $region84: #{cvae_forward.1} parent=0 // pred_region
    _
  $region85: #{cvae_forward.1} parent=0 // pred_fallthru
    _
  %v68 = vld [vmem:[%s1] sm:$0xff]
  %v69 = vld [vmem:[%s0] sm:$0xff]
  %v70 = vld [vmem:[%s3] sm:$0xff]
  %v71 = vld [vmem:[%s3 + $0x8] sm:$0xff]
  %v72 = vld [vmem:[%s5] sm:$0x1]
  %v74 = vlaneseq
  %v75 = vshrl.u32 %v74, 7
  %v76 = vsub.s32 0, %v75
  %v77 = vrot.slane %v72, %v76
  %vm79 = vcmask 130048
  %v81 = vsel %vm79, %v69, 0
  %83 = vmatprep.subr.mxu0 0.0
  %84 = vmatpush1.msra.mxu0 %v70
  %85 = vmatprep.subr.mxu0 0.0
  %86 = vmatpush1.msra.mxu0 %v71
  %87 = vmatprep.subr.mxu0 0.0
  %88 = vmatpush1.msra.mxu0 0.0
  %89 = vmatprep.subr.mxu0 0.0
  %90 = vmatpush1.msra.mxu0 0.0
  %91 = vmatprep.subr.mxu0 0.0
  %92 = vmatpush1.msra.mxu0 0.0
  %93 = vmatprep.subr.mxu0 0.0
  %94 = vmatpush1.msra.mxu0 0.0
  %95 = vmatprep.subr.mxu0 0.0
  %96 = vmatpush1.msra.mxu0 0.0
  %97 = vmatprep.subr.mxu0 0.0
  %98 = vmatpush1.msra.mxu0 0.0
  %99 = vmatprep.subr.mxu0 0.0
  %100 = vmatpush1.msra.mxu0 0.0
  %101 = vmatprep.subr.mxu0 0.0
  %102 = vmatpush1.msra.mxu0 0.0
  %103 = vmatprep.subr.mxu0 0.0
  %104 = vmatpush1.msra.mxu0 0.0
  %105 = vmatprep.subr.mxu0 0.0
  %106 = vmatpush1.msra.mxu0 0.0
  %107 = vmatprep.subr.mxu0 0.0
  %108 = vmatpush1.msra.mxu0 0.0
  %109 = vmatprep.subr.mxu0 0.0
  %110 = vmatpush1.msra.mxu0 0.0
  %111 = vmatprep.subr.mxu0 0.0
  %112 = vmatpush1.msra.mxu0 0.0
  %113 = vmatprep.subr.mxu0 0.0
  %114 = vmatpush1.msra.mxu0 0.0
  %115 = vmatprep.subr.mxu0 0.0
  %116 = vmatpush1.msra.mxu0 0.0
  %117 = vmatprep.subr.mxu0 0.0
  %118 = vmatpush1.msra.mxu0 0.0
  %119 = vmatprep.subr.mxu0 0.0
  %120 = vmatpush1.msra.mxu0 0.0
  %121 = vmatprep.subr.mxu0 0.0
  %122 = vmatpush1.msra.mxu0 0.0
  %123 = vmatprep.subr.mxu0 0.0
  %124 = vmatpush1.msra.mxu0 0.0
  %125 = vmatprep.subr.mxu0 0.0
  %126 = vmatpush1.msra.mxu0 0.0
  %127 = vmatprep.subr.mxu0 0.0
  %128 = vmatpush1.msra.mxu0 0.0
  %129 = vmatprep.subr.mxu0 0.0
  %130 = vmatpush1.msra.mxu0 0.0
  %131 = vmatprep.subr.mxu0 0.0
  %132 = vmatpush1.msra.mxu0 0.0
  %133 = vmatprep.subr.mxu0 0.0
  %134 = vmatpush1.msra.mxu0 0.0
  %135 = vmatprep.subr.mxu0 0.0
  %136 = vmatpush1.msra.mxu0 0.0
  %137 = vmatprep.subr.mxu0 0.0
  %138 = vmatpush1.msra.mxu0 0.0
  %139 = vmatprep.subr.mxu0 0.0
  %140 = vmatpush1.msra.mxu0 0.0
  %141 = vmatprep.subr.mxu0 0.0
  %142 = vmatpush1.msra.mxu0 0.0
  %143 = vmatprep.subr.mxu0 0.0
  %144 = vmatpush1.msra.mxu0 0.0
  %145 = vmatprep.subr.mxu0 0.0
  %146 = vmatpush1.msra.mxu0 0.0
  %147 = vmatprep.mubr.f32.mxu0 0.0
  %148 = vmatmul.mubr.f32.gmra.mrb[0].mxu0 %v81
  %v149 = vpop.f32.mrb[0].mxu0
  %v150 = vadd.f32 %v77, %v149
  %v151 = vpop.f32.mrb[0].mxu0
  %152 = vdwg.mxu0
  %v153 = vld [vmem:[%s4] sm:$0x1]
  %155 = vset.pattern.permute.xlu0 0
  %156 = vperm.xlu0 %155, %v68
  %v157 = vpop.permute.xlu0 %156
  %v160 = vlaneseq
  %v161 = vshrl.u32 %v160, 7
  %v162 = vsub.s32 0, %v161
  %v163 = vrot.slane %v153, %v162
  %v165 = vmul.f32 %v157, %v163
  %v166 = vadd.f32 %v150, %v165
  %v167 = vmax.f32 %v166, 0.0
  %v168 = vld [vmem:[%s6] sm:$0xff]
  %v169 = vld [vmem:[%s6 + $0x8] sm:$0xff]
  %v170 = vld [vmem:[%s6 + $0x10] sm:$0xff]
  %v171 = vld [vmem:[%s6 + $0x18] sm:$0xff]
  %v172 = vld [vmem:[%s6 + $0x20] sm:$0xff]
  %v173 = vld [vmem:[%s6 + $0x28] sm:$0xff]
  %v174 = vld [vmem:[%s6 + $0x30] sm:$0xff]
  %v175 = vld [vmem:[%s6 + $0x38] sm:$0xff]
  %v176 = vld [vmem:[%s6 + $0x40] sm:$0xff]
  %v177 = vld [vmem:[%s6 + $0x48] sm:$0xff]
  %v178 = vld [vmem:[%s6 + $0x50] sm:$0xff]
  %v179 = vld [vmem:[%s6 + $0x58] sm:$0xff]
  %v180 = vld [vmem:[%s6 + $0x60] sm:$0xff]
  %v181 = vld [vmem:[%s6 + $0x68] sm:$0xff]
  %v182 = vld [vmem:[%s6 + $0x70] sm:$0xff]
  %v183 = vld [vmem:[%s6 + $0x78] sm:$0xff]
  %v184 = vld [vmem:[%s7] sm:$0x1]
  %v186 = vlaneseq
  %v187 = vshrl.u32 %v186, 7
  %v188 = vsub.s32 0, %v187
  %v189 = vrot.slane %v184, %v188
  %191 = vmatprep.subr.mxu0 0.0
  %192 = vmatpush1.msra.mxu0 %v168
  %193 = vmatprep.subr.mxu0 0.0
  %194 = vmatpush1.msra.mxu0 %v169
  %195 = vmatprep.subr.mxu0 0.0
  %196 = vmatpush1.msra.mxu0 %v170
  %197 = vmatprep.subr.mxu0 0.0
  %198 = vmatpush1.msra.mxu0 %v171
  %199 = vmatprep.subr.mxu0 0.0
  %200 = vmatpush1.msra.mxu0 %v172
  %201 = vmatprep.subr.mxu0 0.0
  %202 = vmatpush1.msra.mxu0 %v173
  %203 = vmatprep.subr.mxu0 0.0
  %204 = vmatpush1.msra.mxu0 %v174
  %205 = vmatprep.subr.mxu0 0.0
  %206 = vmatpush1.msra.mxu0 %v175
  %207 = vmatprep.subr.mxu0 0.0
  %208 = vmatpush1.msra.mxu0 %v176
  %209 = vmatprep.subr.mxu0 0.0
  %210 = vmatpush1.msra.mxu0 %v177
  %211 = vmatprep.subr.mxu0 0.0
  %212 = vmatpush1.msra.mxu0 %v178
  %213 = vmatprep.subr.mxu0 0.0
  %214 = vmatpush1.msra.mxu0 %v179
  %215 = vmatprep.subr.mxu0 0.0
  %216 = vmatpush1.msra.mxu0 %v180
  %217 = vmatprep.subr.mxu0 0.0
  %218 = vmatpush1.msra.mxu0 %v181
  %219 = vmatprep.subr.mxu0 0.0
  %220 = vmatpush1.msra.mxu0 %v182
  %221 = vmatprep.subr.mxu0 0.0
  %222 = vmatpush1.msra.mxu0 %v183
  %223 = vmatprep.subr.mxu0 0.0
  %224 = vmatpush1.msra.mxu0 0.0
  %225 = vmatprep.subr.mxu0 0.0
  %226 = vmatpush1.msra.mxu0 0.0
  %227 = vmatprep.subr.mxu0 0.0
  %228 = vmatpush1.msra.mxu0 0.0
  %229 = vmatprep.subr.mxu0 0.0
  %230 = vmatpush1.msra.mxu0 0.0
  %231 = vmatprep.subr.mxu0 0.0
  %232 = vmatpush1.msra.mxu0 0.0
  %233 = vmatprep.subr.mxu0 0.0
  %234 = vmatpush1.msra.mxu0 0.0
  %235 = vmatprep.subr.mxu0 0.0
  %236 = vmatpush1.msra.mxu0 0.0
  %237 = vmatprep.subr.mxu0 0.0
  %238 = vmatpush1.msra.mxu0 0.0
  %239 = vmatprep.subr.mxu0 0.0
  %240 = vmatpush1.msra.mxu0 0.0
  %241 = vmatprep.subr.mxu0 0.0
  %242 = vmatpush1.msra.mxu0 0.0
  %243 = vmatprep.subr.mxu0 0.0
  %244 = vmatpush1.msra.mxu0 0.0
  %245 = vmatprep.subr.mxu0 0.0
  %246 = vmatpush1.msra.mxu0 0.0
  %247 = vmatprep.subr.mxu0 0.0
  %248 = vmatpush1.msra.mxu0 0.0
  %249 = vmatprep.subr.mxu0 0.0
  %250 = vmatpush1.msra.mxu0 0.0
  %251 = vmatprep.subr.mxu0 0.0
  %252 = vmatpush1.msra.mxu0 0.0
  %253 = vmatprep.subr.mxu0 0.0
  %254 = vmatpush1.msra.mxu0 0.0
  %255 = vmatprep.mubr.f32.mxu0 0.0
  %256 = vmatmul.mubr.f32.gmra.mrb[0].mxu0 %v167
  %v257 = vpop.f32.mrb[0].mxu0
  %v258 = vadd.f32 %v189, %v257
  %v259 = vpop.f32.mrb[0].mxu0
  %260 = vdwg.mxu0
  %v261 = vmax.f32 %v258, 0.0
  %v262 = vld [vmem:[%s8] sm:$0xff]
  %v263 = vld [vmem:[%s8 + $0x8] sm:$0xff]
  %v264 = vld [vmem:[%s8 + $0x10] sm:$0xff]
  %v265 = vld [vmem:[%s8 + $0x18] sm:$0xff]
  %v266 = vld [vmem:[%s8 + $0x20] sm:$0xff]
  %v267 = vld [vmem:[%s8 + $0x28] sm:$0xff]
  %v268 = vld [vmem:[%s8 + $0x30] sm:$0xff]
  %v269 = vld [vmem:[%s8 + $0x38] sm:$0xff]
  %v270 = vld [vmem:[%s9] sm:$0x1]
  %v272 = vlaneseq
  %v273 = vshrl.u32 %v272, 7
  %v274 = vsub.s32 0, %v273
  %v275 = vrot.slane %v270, %v274
  %vm277 = vcmask 523264
  %v279 = vsel %vm277, %v261, 0
  %281 = vmatprep.subr.mxu0 0.0
  %282 = vmatpush1.msra.mxu0 %v262
  %283 = vmatprep.subr.mxu0 0.0
  %284 = vmatpush1.msra.mxu0 %v263
  %285 = vmatprep.subr.mxu0 0.0
  %286 = vmatpush1.msra.mxu0 %v264
  %287 = vmatprep.subr.mxu0 0.0
  %288 = vmatpush1.msra.mxu0 %v265
  %289 = vmatprep.subr.mxu0 0.0
  %290 = vmatpush1.msra.mxu0 %v266
  %291 = vmatprep.subr.mxu0 0.0
  %292 = vmatpush1.msra.mxu0 %v267
  %293 = vmatprep.subr.mxu0 0.0
  %294 = vmatpush1.msra.mxu0 %v268
  %295 = vmatprep.subr.mxu0 0.0
  %296 = vmatpush1.msra.mxu0 %v269
  %297 = vmatprep.subr.mxu0 0.0
  %298 = vmatpush1.msra.mxu0 0.0
  %299 = vmatprep.subr.mxu0 0.0
  %300 = vmatpush1.msra.mxu0 0.0
  %301 = vmatprep.subr.mxu0 0.0
  %302 = vmatpush1.msra.mxu0 0.0
  %303 = vmatprep.subr.mxu0 0.0
  %304 = vmatpush1.msra.mxu0 0.0
  %305 = vmatprep.subr.mxu0 0.0
  %306 = vmatpush1.msra.mxu0 0.0
  %307 = vmatprep.subr.mxu0 0.0
  %308 = vmatpush1.msra.mxu0 0.0
  %309 = vmatprep.subr.mxu0 0.0
  %310 = vmatpush1.msra.mxu0 0.0
  %311 = vmatprep.subr.mxu0 0.0
  %312 = vmatpush1.msra.mxu0 0.0
  %313 = vmatprep.subr.mxu0 0.0
  %314 = vmatpush1.msra.mxu0 0.0
  %315 = vmatprep.subr.mxu0 0.0
  %316 = vmatpush1.msra.mxu0 0.0
  %317 = vmatprep.subr.mxu0 0.0
  %318 = vmatpush1.msra.mxu0 0.0
  %319 = vmatprep.subr.mxu0 0.0
  %320 = vmatpush1.msra.mxu0 0.0
  %321 = vmatprep.subr.mxu0 0.0
  %322 = vmatpush1.msra.mxu0 0.0
  %323 = vmatprep.subr.mxu0 0.0
  %324 = vmatpush1.msra.mxu0 0.0
  %325 = vmatprep.subr.mxu0 0.0
  %326 = vmatpush1.msra.mxu0 0.0
  %327 = vmatprep.subr.mxu0 0.0
  %328 = vmatpush1.msra.mxu0 0.0
  %329 = vmatprep.subr.mxu0 0.0
  %330 = vmatpush1.msra.mxu0 0.0
  %331 = vmatprep.subr.mxu0 0.0
  %332 = vmatpush1.msra.mxu0 0.0
  %333 = vmatprep.subr.mxu0 0.0
  %334 = vmatpush1.msra.mxu0 0.0
  %335 = vmatprep.subr.mxu0 0.0
  %336 = vmatpush1.msra.mxu0 0.0
  %337 = vmatprep.subr.mxu0 0.0
  %338 = vmatpush1.msra.mxu0 0.0
  %339 = vmatprep.subr.mxu0 0.0
  %340 = vmatpush1.msra.mxu0 0.0
  %341 = vmatprep.subr.mxu0 0.0
  %342 = vmatpush1.msra.mxu0 0.0
  %343 = vmatprep.subr.mxu0 0.0
  %344 = vmatpush1.msra.mxu0 0.0
  %345 = vmatprep.mubr.f32.mxu0 0.0
  %346 = vmatmul.mubr.f32.gmra.mrb[0].mxu0 %v279
  %v347 = vpop.f32.mrb[0].mxu0
  %v348 = vadd.f32 %v275, %v347
  %v349 = vpop.f32.mrb[0].mxu0
  %350 = vdwg.mxu0
  %v351 = vmax.f32 %v348, 0.0
  %v352 = vld [vmem:[%s10] sm:$0xff]
  %v353 = vld [vmem:[%s10 + $0x8] sm:$0xff]
  %v354 = vld [vmem:[%s11] sm:$0x1]
  %v356 = vlaneseq
  %v357 = vshrl.u32 %v356, 7
  %v358 = vsub.s32 0, %v357
  %v359 = vrot.slane %v354, %v358
  %v362 = vsel %vm79, %v351, 0
  %364 = vmatprep.subr.mxu0 0.0
  %365 = vmatpush1.msra.mxu0 %v352
  %366 = vmatprep.subr.mxu0 0.0
  %367 = vmatpush1.msra.mxu0 %v353
  %368 = vmatprep.subr.mxu0 0.0
  %369 = vmatpush1.msra.mxu0 0.0
  %370 = vmatprep.subr.mxu0 0.0
  %371 = vmatpush1.msra.mxu0 0.0
  %372 = vmatprep.subr.mxu0 0.0
  %373 = vmatpush1.msra.mxu0 0.0
  %374 = vmatprep.subr.mxu0 0.0
  %375 = vmatpush1.msra.mxu0 0.0
  %376 = vmatprep.subr.mxu0 0.0
  %377 = vmatpush1.msra.mxu0 0.0
  %378 = vmatprep.subr.mxu0 0.0
  %379 = vmatpush1.msra.mxu0 0.0
  %380 = vmatprep.subr.mxu0 0.0
  %381 = vmatpush1.msra.mxu0 0.0
  %382 = vmatprep.subr.mxu0 0.0
  %383 = vmatpush1.msra.mxu0 0.0
  %384 = vmatprep.subr.mxu0 0.0
  %385 = vmatpush1.msra.mxu0 0.0
  %386 = vmatprep.subr.mxu0 0.0
  %387 = vmatpush1.msra.mxu0 0.0
  %388 = vmatprep.subr.mxu0 0.0
  %389 = vmatpush1.msra.mxu0 0.0
  %390 = vmatprep.subr.mxu0 0.0
  %391 = vmatpush1.msra.mxu0 0.0
  %392 = vmatprep.subr.mxu0 0.0
  %393 = vmatpush1.msra.mxu0 0.0
  %394 = vmatprep.subr.mxu0 0.0
  %395 = vmatpush1.msra.mxu0 0.0
  %396 = vmatprep.subr.mxu0 0.0
  %397 = vmatpush1.msra.mxu0 0.0
  %398 = vmatprep.subr.mxu0 0.0
  %399 = vmatpush1.msra.mxu0 0.0
  %400 = vmatprep.subr.mxu0 0.0
  %401 = vmatpush1.msra.mxu0 0.0
  %402 = vmatprep.subr.mxu0 0.0
  %403 = vmatpush1.msra.mxu0 0.0
  %404 = vmatprep.subr.mxu0 0.0
  %405 = vmatpush1.msra.mxu0 0.0
  %406 = vmatprep.subr.mxu0 0.0
  %407 = vmatpush1.msra.mxu0 0.0
  %408 = vmatprep.subr.mxu0 0.0
  %409 = vmatpush1.msra.mxu0 0.0
  %410 = vmatprep.subr.mxu0 0.0
  %411 = vmatpush1.msra.mxu0 0.0
  %412 = vmatprep.subr.mxu0 0.0
  %413 = vmatpush1.msra.mxu0 0.0
  %414 = vmatprep.subr.mxu0 0.0
  %415 = vmatpush1.msra.mxu0 0.0
  %416 = vmatprep.subr.mxu0 0.0
  %417 = vmatpush1.msra.mxu0 0.0
  %418 = vmatprep.subr.mxu0 0.0
  %419 = vmatpush1.msra.mxu0 0.0
  %420 = vmatprep.subr.mxu0 0.0
  %421 = vmatpush1.msra.mxu0 0.0
  %422 = vmatprep.subr.mxu0 0.0
  %423 = vmatpush1.msra.mxu0 0.0
  %424 = vmatprep.subr.mxu0 0.0
  %425 = vmatpush1.msra.mxu0 0.0
  %426 = vmatprep.subr.mxu0 0.0
  %427 = vmatpush1.msra.mxu0 0.0
  %428 = vmatprep.mubr.f32.mxu0 0.0
  %429 = vmatmul.mubr.f32.gmra.mrb[0].mxu0 %v362
  %v430 = vpop.f32.mrb[0].mxu0
  %v431 = vadd.f32 %v359, %v430
  %v432 = vpop.f32.mrb[0].mxu0
  %433 = vdwg.mxu0
  %v434 = vld [vmem:[%s2] sm:$0xff]
  %v435 = vmul.f32 %v431, 0.5
  %v436 = vmul.f32 %v435, 1.442695
  %v437 = vpow.pop %v436
  %v438 = vmul.f32 %v434, %v437
  %v439 = vadd.f32 %v438, %v431
  %v440 = vld [vmem:[%s12] sm:$0xff]
  %v441 = vld [vmem:[%s14] sm:$0x1]
  %v443 = vlaneseq
  %v444 = vshrl.u32 %v443, 7
  %v445 = vsub.s32 0, %v444
  %v446 = vrot.slane %v441, %v445
  %vm448 = vcmask 64512
  %v450 = vsel %vm448, %v439, 0
  %452 = vmatprep.subr.mxu0 0.0
  %453 = vmatpush1.msra.mxu0 %v440
  %454 = vmatprep.subr.mxu0 0.0
  %455 = vmatpush1.msra.mxu0 0.0
  %456 = vmatprep.subr.mxu0 0.0
  %457 = vmatpush1.msra.mxu0 0.0
  %458 = vmatprep.subr.mxu0 0.0
  %459 = vmatpush1.msra.mxu0 0.0
  %460 = vmatprep.subr.mxu0 0.0
  %461 = vmatpush1.msra.mxu0 0.0
  %462 = vmatprep.subr.mxu0 0.0
  %463 = vmatpush1.msra.mxu0 0.0
  %464 = vmatprep.subr.mxu0 0.0
  %465 = vmatpush1.msra.mxu0 0.0
  %466 = vmatprep.subr.mxu0 0.0
  %467 = vmatpush1.msra.mxu0 0.0
  %468 = vmatprep.subr.mxu0 0.0
  %469 = vmatpush1.msra.mxu0 0.0
  %470 = vmatprep.subr.mxu0 0.0
  %471 = vmatpush1.msra.mxu0 0.0
  %472 = vmatprep.subr.mxu0 0.0
  %473 = vmatpush1.msra.mxu0 0.0
  %474 = vmatprep.subr.mxu0 0.0
  %475 = vmatpush1.msra.mxu0 0.0
  %476 = vmatprep.subr.mxu0 0.0
  %477 = vmatpush1.msra.mxu0 0.0
  %478 = vmatprep.subr.mxu0 0.0
  %479 = vmatpush1.msra.mxu0 0.0
  %480 = vmatprep.subr.mxu0 0.0
  %481 = vmatpush1.msra.mxu0 0.0
  %482 = vmatprep.subr.mxu0 0.0
  %483 = vmatpush1.msra.mxu0 0.0
  %484 = vmatprep.subr.mxu0 0.0
  %485 = vmatpush1.msra.mxu0 0.0
  %486 = vmatprep.subr.mxu0 0.0
  %487 = vmatpush1.msra.mxu0 0.0
  %488 = vmatprep.subr.mxu0 0.0
  %489 = vmatpush1.msra.mxu0 0.0
  %490 = vmatprep.subr.mxu0 0.0
  %491 = vmatpush1.msra.mxu0 0.0
  %492 = vmatprep.subr.mxu0 0.0
  %493 = vmatpush1.msra.mxu0 0.0
  %494 = vmatprep.subr.mxu0 0.0
  %495 = vmatpush1.msra.mxu0 0.0
  %496 = vmatprep.subr.mxu0 0.0
  %497 = vmatpush1.msra.mxu0 0.0
  %498 = vmatprep.subr.mxu0 0.0
  %499 = vmatpush1.msra.mxu0 0.0
  %500 = vmatprep.subr.mxu0 0.0
  %501 = vmatpush1.msra.mxu0 0.0
  %502 = vmatprep.subr.mxu0 0.0
  %503 = vmatpush1.msra.mxu0 0.0
  %504 = vmatprep.subr.mxu0 0.0
  %505 = vmatpush1.msra.mxu0 0.0
  %506 = vmatprep.subr.mxu0 0.0
  %507 = vmatpush1.msra.mxu0 0.0
  %508 = vmatprep.subr.mxu0 0.0
  %509 = vmatpush1.msra.mxu0 0.0
  %510 = vmatprep.subr.mxu0 0.0
  %511 = vmatpush1.msra.mxu0 0.0
  %512 = vmatprep.subr.mxu0 0.0
  %513 = vmatpush1.msra.mxu0 0.0
  %514 = vmatprep.subr.mxu0 0.0
  %515 = vmatpush1.msra.mxu0 0.0
  %516 = vmatprep.mubr.f32.mxu0 0.0
  %517 = vmatmul.mubr.f32.gmra.mrb[0].mxu0 %v450
  %v518 = vpop.f32.mrb[0].mxu0
  %v519 = vadd.f32 %v446, %v518
  %v520 = vpop.f32.mrb[0].mxu0
  %521 = vdwg.mxu0
  %v522 = vld [vmem:[%s13] sm:$0x1]
  %v524 = vlaneseq
  %v525 = vshrl.u32 %v524, 7
  %v526 = vsub.s32 0, %v525
  %v527 = vrot.slane %v522, %v526
  %v529 = vmul.f32 %v157, %v527
  %v530 = vadd.f32 %v519, %v529
  %v531 = vmax.f32 %v530, 0.0
  %v532 = vld [vmem:[%s15] sm:$0xff]
  %v533 = vld [vmem:[%s15 + $0x8] sm:$0xff]
  %v534 = vld [vmem:[%s15 + $0x10] sm:$0xff]
  %v535 = vld [vmem:[%s15 + $0x18] sm:$0xff]
  %v536 = vld [vmem:[%s15 + $0x20] sm:$0xff]
  %v537 = vld [vmem:[%s15 + $0x28] sm:$0xff]
  %v538 = vld [vmem:[%s15 + $0x30] sm:$0xff]
  %v539 = vld [vmem:[%s15 + $0x38] sm:$0xff]
  %v540 = vld [vmem:[%s15 + $0x40] sm:$0xff]
  %v541 = vld [vmem:[%s15 + $0x48] sm:$0xff]
  %v542 = vld [vmem:[%s15 + $0x50] sm:$0xff]
  %v543 = vld [vmem:[%s15 + $0x58] sm:$0xff]
  %v544 = vld [vmem:[%s15 + $0x60] sm:$0xff]
  %v545 = vld [vmem:[%s15 + $0x68] sm:$0xff]
  %v546 = vld [vmem:[%s15 + $0x70] sm:$0xff]
  %v547 = vld [vmem:[%s15 + $0x78] sm:$0xff]
  %v548 = vld [vmem:[%s16] sm:$0x1]
  %v550 = vlaneseq
  %v551 = vshrl.u32 %v550, 7
  %v552 = vsub.s32 0, %v551
  %v553 = vrot.slane %v548, %v552
  %555 = vmatprep.subr.mxu0 0.0
  %556 = vmatpush1.msra.mxu0 %v532
  %557 = vmatprep.subr.mxu0 0.0
  %558 = vmatpush1.msra.mxu0 %v533
  %559 = vmatprep.subr.mxu0 0.0
  %560 = vmatpush1.msra.mxu0 %v534
  %561 = vmatprep.subr.mxu0 0.0
  %562 = vmatpush1.msra.mxu0 %v535
  %563 = vmatprep.subr.mxu0 0.0
  %564 = vmatpush1.msra.mxu0 %v536
  %565 = vmatprep.subr.mxu0 0.0
  %566 = vmatpush1.msra.mxu0 %v537
  %567 = vmatprep.subr.mxu0 0.0
  %568 = vmatpush1.msra.mxu0 %v538
  %569 = vmatprep.subr.mxu0 0.0
  %570 = vmatpush1.msra.mxu0 %v539
  %571 = vmatprep.subr.mxu0 0.0
  %572 = vmatpush1.msra.mxu0 %v540
  %573 = vmatprep.subr.mxu0 0.0
  %574 = vmatpush1.msra.mxu0 %v541
  %575 = vmatprep.subr.mxu0 0.0
  %576 = vmatpush1.msra.mxu0 %v542
  %577 = vmatprep.subr.mxu0 0.0
  %578 = vmatpush1.msra.mxu0 %v543
  %579 = vmatprep.subr.mxu0 0.0
  %580 = vmatpush1.msra.mxu0 %v544
  %581 = vmatprep.subr.mxu0 0.0
  %582 = vmatpush1.msra.mxu0 %v545
  %583 = vmatprep.subr.mxu0 0.0
  %584 = vmatpush1.msra.mxu0 %v546
  %585 = vmatprep.subr.mxu0 0.0
  %586 = vmatpush1.msra.mxu0 %v547
  %587 = vmatprep.subr.mxu0 0.0
  %588 = vmatpush1.msra.mxu0 0.0
  %589 = vmatprep.subr.mxu0 0.0
  %590 = vmatpush1.msra.mxu0 0.0
  %591 = vmatprep.subr.mxu0 0.0
  %592 = vmatpush1.msra.mxu0 0.0
  %593 = vmatprep.subr.mxu0 0.0
  %594 = vmatpush1.msra.mxu0 0.0
  %595 = vmatprep.subr.mxu0 0.0
  %596 = vmatpush1.msra.mxu0 0.0
  %597 = vmatprep.subr.mxu0 0.0
  %598 = vmatpush1.msra.mxu0 0.0
  %599 = vmatprep.subr.mxu0 0.0
  %600 = vmatpush1.msra.mxu0 0.0
  %601 = vmatprep.subr.mxu0 0.0
  %602 = vmatpush1.msra.mxu0 0.0
  %603 = vmatprep.subr.mxu0 0.0
  %604 = vmatpush1.msra.mxu0 0.0
  %605 = vmatprep.subr.mxu0 0.0
  %606 = vmatpush1.msra.mxu0 0.0
  %607 = vmatprep.subr.mxu0 0.0
  %608 = vmatpush1.msra.mxu0 0.0
  %609 = vmatprep.subr.mxu0 0.0
  %610 = vmatpush1.msra.mxu0 0.0
  %611 = vmatprep.subr.mxu0 0.0
  %612 = vmatpush1.msra.mxu0 0.0
  %613 = vmatprep.subr.mxu0 0.0
  %614 = vmatpush1.msra.mxu0 0.0
  %615 = vmatprep.subr.mxu0 0.0
  %616 = vmatpush1.msra.mxu0 0.0
  %617 = vmatprep.subr.mxu0 0.0
  %618 = vmatpush1.msra.mxu0 0.0
  %619 = vmatprep.mubr.f32.mxu0 0.0
  %620 = vmatmul.mubr.f32.gmra.mrb[0].mxu0 %v531
  %v621 = vpop.f32.mrb[0].mxu0
  %v622 = vadd.f32 %v553, %v621
  %v623 = vpop.f32.mrb[0].mxu0
  %624 = vdwg.mxu0
  %v625 = vmax.f32 %v622, 0.0
  %v626 = vld [vmem:[%s17] sm:$0xff]
  %v627 = vld [vmem:[%s17 + $0x8] sm:$0xff]
  %v628 = vld [vmem:[%s17 + $0x10] sm:$0xff]
  %v629 = vld [vmem:[%s17 + $0x18] sm:$0xff]
  %v630 = vld [vmem:[%s17 + $0x20] sm:$0xff]
  %v631 = vld [vmem:[%s17 + $0x28] sm:$0xff]
  %v632 = vld [vmem:[%s17 + $0x30] sm:$0xff]
  %v633 = vld [vmem:[%s17 + $0x38] sm:$0xff]
  %v634 = vld [vmem:[%s18] sm:$0x1]
  %v636 = vlaneseq
  %v637 = vshrl.u32 %v636, 7
  %v638 = vsub.s32 0, %v637
  %v639 = vrot.slane %v634, %v638
  %v642 = vsel %vm277, %v625, 0
  %644 = vmatprep.subr.mxu0 0.0
  %645 = vmatpush1.msra.mxu0 %v626
  %646 = vmatprep.subr.mxu0 0.0
  %647 = vmatpush1.msra.mxu0 %v627
  %648 = vmatprep.subr.mxu0 0.0
  %649 = vmatpush1.msra.mxu0 %v628
  %650 = vmatprep.subr.mxu0 0.0
  %651 = vmatpush1.msra.mxu0 %v629
  %652 = vmatprep.subr.mxu0 0.0
  %653 = vmatpush1.msra.mxu0 %v630
  %654 = vmatprep.subr.mxu0 0.0
  %655 = vmatpush1.msra.mxu0 %v631
  %656 = vmatprep.subr.mxu0 0.0
  %657 = vmatpush1.msra.mxu0 %v632
  %658 = vmatprep.subr.mxu0 0.0
  %659 = vmatpush1.msra.mxu0 %v633
  %660 = vmatprep.subr.mxu0 0.0
  %661 = vmatpush1.msra.mxu0 0.0
  %662 = vmatprep.subr.mxu0 0.0
  %663 = vmatpush1.msra.mxu0 0.0
  %664 = vmatprep.subr.mxu0 0.0
  %665 = vmatpush1.msra.mxu0 0.0
  %666 = vmatprep.subr.mxu0 0.0
  %667 = vmatpush1.msra.mxu0 0.0
  %668 = vmatprep.subr.mxu0 0.0
  %669 = vmatpush1.msra.mxu0 0.0
  %670 = vmatprep.subr.mxu0 0.0
  %671 = vmatpush1.msra.mxu0 0.0
  %672 = vmatprep.subr.mxu0 0.0
  %673 = vmatpush1.msra.mxu0 0.0
  %674 = vmatprep.subr.mxu0 0.0
  %675 = vmatpush1.msra.mxu0 0.0
  %676 = vmatprep.subr.mxu0 0.0
  %677 = vmatpush1.msra.mxu0 0.0
  %678 = vmatprep.subr.mxu0 0.0
  %679 = vmatpush1.msra.mxu0 0.0
  %680 = vmatprep.subr.mxu0 0.0
  %681 = vmatpush1.msra.mxu0 0.0
  %682 = vmatprep.subr.mxu0 0.0
  %683 = vmatpush1.msra.mxu0 0.0
  %684 = vmatprep.subr.mxu0 0.0
  %685 = vmatpush1.msra.mxu0 0.0
  %686 = vmatprep.subr.mxu0 0.0
  %687 = vmatpush1.msra.mxu0 0.0
  %688 = vmatprep.subr.mxu0 0.0
  %689 = vmatpush1.msra.mxu0 0.0
  %690 = vmatprep.subr.mxu0 0.0
  %691 = vmatpush1.msra.mxu0 0.0
  %692 = vmatprep.subr.mxu0 0.0
  %693 = vmatpush1.msra.mxu0 0.0
  %694 = vmatprep.subr.mxu0 0.0
  %695 = vmatpush1.msra.mxu0 0.0
  %696 = vmatprep.subr.mxu0 0.0
  %697 = vmatpush1.msra.mxu0 0.0
  %698 = vmatprep.subr.mxu0 0.0
  %699 = vmatpush1.msra.mxu0 0.0
  %700 = vmatprep.subr.mxu0 0.0
  %701 = vmatpush1.msra.mxu0 0.0
  %702 = vmatprep.subr.mxu0 0.0
  %703 = vmatpush1.msra.mxu0 0.0
  %704 = vmatprep.subr.mxu0 0.0
  %705 = vmatpush1.msra.mxu0 0.0
  %706 = vmatprep.subr.mxu0 0.0
  %707 = vmatpush1.msra.mxu0 0.0
  %708 = vmatprep.mubr.f32.mxu0 0.0
  %709 = vmatmul.mubr.f32.gmra.mrb[0].mxu0 %v642
  %v710 = vpop.f32.mrb[0].mxu0
  %v711 = vadd.f32 %v639, %v710
  %v712 = vpop.f32.mrb[0].mxu0
  %713 = vdwg.mxu0
  %v714 = vmax.f32 %v711, 0.0
  %v715 = vld [vmem:[%s19] sm:$0xff]
  %v716 = vld [vmem:[%s19 + $0x8] sm:$0xff]
  %v717 = vld [vmem:[%s19 + $0x10] sm:$0xff]
  %v718 = vld [vmem:[%s19 + $0x18] sm:$0xff]
  %v719 = vld [vmem:[%s19 + $0x20] sm:$0xff]
  %v720 = vld [vmem:[%s19 + $0x28] sm:$0xff]
  %v721 = vld [vmem:[%s19 + $0x30] sm:$0xff]
  %v722 = vld [vmem:[%s19 + $0x38] sm:$0xff]
  %v723 = vld [vmem:[%s19 + $0x40] sm:$0xff]
  %v724 = vld [vmem:[%s19 + $0x48] sm:$0xff]
  %v725 = vld [vmem:[%s19 + $0x50] sm:$0xff]
  %v726 = vld [vmem:[%s19 + $0x58] sm:$0xff]
  %v727 = vld [vmem:[%s19 + $0x60] sm:$0xff]
  %v728 = vld [vmem:[%s19 + $0x68] sm:$0xff]
  %v729 = vld [vmem:[%s19 + $0x70] sm:$0xff]
  %v730 = vld [vmem:[%s19 + $0x78] sm:$0xff]
  %v731 = vld [vmem:[%s20] sm:$0x1]
  %v733 = vlaneseq
  %v734 = vshrl.u32 %v733, 7
  %v735 = vsub.s32 0, %v734
  %v736 = vrot.slane %v731, %v735
  %738 = vmatprep.subr.mxu0 0.0
  %739 = vmatpush1.msra.mxu0 %v715
  %740 = vmatprep.subr.mxu0 0.0
  %741 = vmatpush1.msra.mxu0 %v716
  %742 = vmatprep.subr.mxu0 0.0
  %743 = vmatpush1.msra.mxu0 %v717
  %744 = vmatprep.subr.mxu0 0.0
  %745 = vmatpush1.msra.mxu0 %v718
  %746 = vmatprep.subr.mxu0 0.0
  %747 = vmatpush1.msra.mxu0 %v719
  %748 = vmatprep.subr.mxu0 0.0
  %749 = vmatpush1.msra.mxu0 %v720
  %750 = vmatprep.subr.mxu0 0.0
  %751 = vmatpush1.msra.mxu0 %v721
  %752 = vmatprep.subr.mxu0 0.0
  %753 = vmatpush1.msra.mxu0 %v722
  %754 = vmatprep.subr.mxu0 0.0
  %755 = vmatpush1.msra.mxu0 %v723
  %756 = vmatprep.subr.mxu0 0.0
  %757 = vmatpush1.msra.mxu0 %v724
  %758 = vmatprep.subr.mxu0 0.0
  %759 = vmatpush1.msra.mxu0 %v725
  %760 = vmatprep.subr.mxu0 0.0
  %761 = vmatpush1.msra.mxu0 %v726
  %762 = vmatprep.subr.mxu0 0.0
  %763 = vmatpush1.msra.mxu0 %v727
  %764 = vmatprep.subr.mxu0 0.0
  %765 = vmatpush1.msra.mxu0 %v728
  %766 = vmatprep.subr.mxu0 0.0
  %767 = vmatpush1.msra.mxu0 %v729
  %768 = vmatprep.subr.mxu0 0.0
  %769 = vmatpush1.msra.mxu0 %v730
  %770 = vmatprep.subr.mxu0 0.0
  %771 = vmatpush1.msra.mxu0 0.0
  %772 = vmatprep.subr.mxu0 0.0
  %773 = vmatpush1.msra.mxu0 0.0
  %774 = vmatprep.subr.mxu0 0.0
  %775 = vmatpush1.msra.mxu0 0.0
  %776 = vmatprep.subr.mxu0 0.0
  %777 = vmatpush1.msra.mxu0 0.0
  %778 = vmatprep.subr.mxu0 0.0
  %779 = vmatpush1.msra.mxu0 0.0
  %780 = vmatprep.subr.mxu0 0.0
  %781 = vmatpush1.msra.mxu0 0.0
  %782 = vmatprep.subr.mxu0 0.0
  %783 = vmatpush1.msra.mxu0 0.0
  %784 = vmatprep.subr.mxu0 0.0
  %785 = vmatpush1.msra.mxu0 0.0
  %786 = vmatprep.subr.mxu0 0.0
  %787 = vmatpush1.msra.mxu0 0.0
  %788 = vmatprep.subr.mxu0 0.0
  %789 = vmatpush1.msra.mxu0 0.0
  %790 = vmatprep.subr.mxu0 0.0
  %791 = vmatpush1.msra.mxu0 0.0
  %792 = vmatprep.subr.mxu0 0.0
  %793 = vmatpush1.msra.mxu0 0.0
  %794 = vmatprep.subr.mxu0 0.0
  %795 = vmatpush1.msra.mxu0 0.0
  %796 = vmatprep.subr.mxu0 0.0
  %797 = vmatpush1.msra.mxu0 0.0
  %798 = vmatprep.subr.mxu0 0.0
  %799 = vmatpush1.msra.mxu0 0.0
  %800 = vmatprep.subr.mxu0 0.0
  %801 = vmatpush1.msra.mxu0 0.0
  %802 = vmatprep.mubr.f32.mxu0 0.0
  %803 = vmatmul.mubr.f32.gmra.mrb[0].mxu0 %v714
  %v804 = vpop.f32.mrb[0].mxu0
  %v805 = vadd.f32 %v736, %v804
  %v806 = vpop.f32.mrb[0].mxu0
  %807 = vdwg.mxu0
  %v808 = vxor.u32 %v805, 2147483648
  %v809 = vmul.f32 %v808, 1.442695
  %v810 = vpow.pop %v809
  %v811 = vadd.f32 %v810, 1.0
  %v812 = vrcp.pop %v811
  %v813 = vmul.f32 1.0, %v812
  %814 = vst.msk [vmem:[%s21] sm:$0xff] %vm79, %v813
  %816 = vrot.lane.b32.xlu0 %v431, 16
  %v817 = vpop.permute.xlu0 %816
  %vm819 = vcmask 195712
  %820 = vst.msk [vmem:[%s21] sm:$0xff] %vm819, %v817
  // Predicated region
  $region86: #{cvae_forward.1} parent=0 // pred_check
    _
  $region87: #{cvae_forward.1} parent=0 // pred_check_branch
    %822 = sbr.rel (0) target = $region89
  $region88: #{cvae_forward.1} parent=0 // pred_region
    _
  $region89: #{cvae_forward.1} parent=0 // pred_fallthru
    _
  // Predicated region
  $region90: #{cvae_forward.1} parent=0 // pred_check
    _
  $region91: #{cvae_forward.1} parent=0 // pred_check_branch
    %824 = sbr.rel (0) target = $region93
  $region92: #{cvae_forward.1} parent=0 // pred_region
    _
  $region93: #{cvae_forward.1} parent=0 // pred_fallthru
    _

</llo_original>
